<compile_context>
chip_gen: v5e
topology: v5e:2x2
jax: 0.10.0
libtpu: 0.0.40
codegen_flags: <defaults>
</compile_context>

<pallas_src>
import functools

import jax
import jax.numpy as jnp
from jax.experimental import pallas as pl
from jax.experimental.pallas import tpu as pltpu


def _round_up(a, b):
    return (a + b - 1) // b * b


def _edge_mlp_kernel(idx_ref, p_src_ref, p_dst_ref, w2_ref, b2_ref,
                     w3_ref, b3_ref, o_ref):
    """Transposed edge MLP: edges live on the lane axis.

    idx_ref   : [2, tile_e]  int32 edge endpoints
    p_src_ref : [h,  Np]     (x @ W1_src + b1)^T, node axis padded to 128
    p_dst_ref : [h,  Np]     (x @ W1_dst)^T
    w2_ref    : [h2, h], w3_ref: [d_out, h2]   (PyTorch [out, in] layout)
    b2_ref    : [h2, 1], b3_ref: [d_out, 1]    (broadcast over lanes)
    o_ref     : [d_out, tile_e]
    """
    n_nodes_p = p_src_ref.shape[1]
    tile_e = idx_ref.shape[1]
    acc_dt = jnp.float32

    # One-hot row-gather as an MXU contraction (exact: 0/1 entries).
    node_iota = jax.lax.broadcasted_iota(jnp.int32, (n_nodes_p, tile_e), 0)
    oh_src = (node_iota == idx_ref[0:1, :]).astype(acc_dt)   # [Np, T]
    oh_dst = (node_iota == idx_ref[1:2, :]).astype(acc_dt)   # [Np, T]

    # fc1 (split across the two concatenated halves; b1 pre-folded) + ReLU
    h1 = jnp.dot(p_src_ref[...], oh_src, preferred_element_type=acc_dt)
    h1 = h1 + jnp.dot(p_dst_ref[...], oh_dst, preferred_element_type=acc_dt)
    h1 = jnp.maximum(h1, 0.0)
    # (dropout p=0.7 -> identity in eval mode)

    # fc2 + ReLU
    h2 = jnp.dot(w2_ref[...], h1, preferred_element_type=acc_dt)
    h2 = jnp.maximum(h2 + b2_ref[...], 0.0)
    # (dropout p=0.7 -> identity in eval mode)

    # fc3 + Sigmoid, lane-dense store
    logits = jnp.dot(w3_ref[...], h2, preferred_element_type=acc_dt)
    o_ref[...] = jax.nn.sigmoid(logits + b3_ref[...]).astype(o_ref.dtype)


@functools.partial(jax.jit, static_argnames=("tile_e",))
def classifier1_forward(x, edge_label_index, params, *, tile_e=None):
    """x: [num_nodes, feat_dim] f32, edge_label_index: [2, num_edges] int."""
    num_nodes, feat_dim = x.shape
    E = edge_label_index.shape[1]

    w1, b1 = params["w1"], params["b1"]
    w2, b2 = params["w2"], params["b2"]
    w3, b3 = params["w3"], params["b3"]
    d_in, h = w1.shape
    h2 = w2.shape[1]
    d_out = w3.shape[1]
    assert d_in == 2 * feat_dim, "fc1 input must be the 2-node concat width"

    # Per-node fc1 precompute (split W1 -> src/dst halves; fold b1 into src).
    # Removes the [E, 2*feat] HBM round trip entirely.
    p_src = (x @ w1[:feat_dim, :] + b1).T     # [h, num_nodes]
    p_dst = (x @ w1[feat_dim:, :]).T          # [h, num_nodes]
    n_pad = _round_up(max(num_nodes, 1), 128)
    p_src = jnp.pad(p_src, ((0, 0), (0, n_pad - num_nodes)))
    p_dst = jnp.pad(p_dst, ((0, 0), (0, n_pad - num_nodes)))

    # Edge tile: big enough to amortize per-grid-step overhead, capped so
    # (a) large edge sets still produce >=2 grid steps (megacore) and
    # (b) the [Np, tile_e] one-hot intermediates stay at a few MiB of VMEM
    #     regardless of graph size.
    if tile_e is None:
        onehot_budget = 6 * 1024 * 1024                       # bytes, pair of one-hots
        vmem_cap = max(128, (onehot_budget // (8 * n_pad)) // 128 * 128)
        tile_e = max(128, min(2048, vmem_cap,
                              _round_up(pl.cdiv(E, 2), 128)))
    else:
        tile_e = _round_up(int(tile_e), 128)
    e_pad = _round_up(E, tile_e)              # ragged tail -> pad, no assert
    eidx = jnp.pad(edge_label_index.astype(jnp.int32),
                   ((0, 0), (0, e_pad - E)))

    grid = (e_pad // tile_e,)
    vmem_full = pl.BlockSpec(memory_space=pltpu.MemorySpace.VMEM)

    # Rough VMEM budget (resident tables + one-hot/iota temps + double-buffered
    # idx/out tiles + intermediates); keep the scoped limit comfortably above.
    est = (2 * h * n_pad * 4
           + 3 * 2 * n_pad * tile_e * 4
           + (h * h2 + h2 * d_out + h2 + d_out) * 4
           + 2 * (2 + d_out) * tile_e * 4
           + 2 * (h + h2 + d_out) * tile_e * 4)
    vmem_limit = int(min(100 * 1024 * 1024, max(32 * 1024 * 1024, 2 * est)))

    out_t = pl.pallas_call(
        _edge_mlp_kernel,
        out_shape=jax.ShapeDtypeStruct((d_out, e_pad), jnp.float32),
        grid_spec=pltpu.PrefetchScalarGridSpec(
            num_scalar_prefetch=0,
            grid=grid,
            in_specs=[
                pl.BlockSpec((2, tile_e), lambda i: (0, i)),   # edge indices
                vmem_full,   # P_src  [h, Np]   (resident, no per-step DMA)
                vmem_full,   # P_dst  [h, Np]
                vmem_full,   # W2     [h2, h]
                vmem_full,   # b2     [h2, 1]
                vmem_full,   # W3     [d_out, h2]
                vmem_full,   # b3     [d_out, 1]
            ],
            out_specs=pl.BlockSpec((d_out, tile_e), lambda i: (0, i)),
        ),
        compiler_params=pltpu.CompilerParams(
            dimension_semantics=("parallel",),
            vmem_limit_bytes=vmem_limit),   # v5e default is only 16 MiB
    )(eidx, p_src, p_dst,
      w2.T, b2.reshape(-1, 1), w3.T, b3.reshape(-1, 1))

    # drop edge padding, back to the PyTorch [num_edges, output_dim] layout
    return out_t[:, :E].T


def init_classifier1_params(key, input_dim, hidden_dim, output_dim):
    """Deterministic PyTorch-Linear-style init (uniform +-1/sqrt(fan_in))."""
    dims = [(input_dim, hidden_dim),
            (hidden_dim, hidden_dim // 2),
            (hidden_dim // 2, output_dim)]
    params = {}
    for n, (fan_in, fan_out) in enumerate(dims, start=1):
        key, kw, kb = jax.random.split(key, 3)
        bound = 1.0 / jnp.sqrt(fan_in)
        params[f"w{n}"] = jax.random.uniform(        # stored [in, out] == W^T
            kw, (fan_in, fan_out), jnp.float32, -bound, bound)
        params[f"b{n}"] = jax.random.uniform(
            kb, (fan_out,), jnp.float32, -bound, bound)
    return params


def classifier1_reference(x, edge_label_index, params):
    """Pure-JAX reference of the PyTorch forward (eval mode)."""
    ef1 = jnp.take(x, edge_label_index[0], axis=0)
    ef2 = jnp.take(x, edge_label_index[1], axis=0)
    h = jnp.concatenate([ef1, ef2], axis=-1)
    h = jnp.maximum(h @ params["w1"] + params["b1"], 0.0)
    h = jnp.maximum(h @ params["w2"] + params["b2"], 0.0)
    h = h @ params["w3"] + params["b3"]
    return jax.nn.sigmoid(h)


if __name__ == "__main__":
    key = jax.random.PRNGKey(0)
    k_x, k_idx, k_p = jax.random.split(key, 3)

    num_nodes = 64
    feat_dim = 16
    input_dim = 2 * feat_dim      # fc1 input = concat of two node features
    hidden_dim = 32
    output_dim = 8
    num_edges = 200               # deliberately NOT tile-aligned (ragged tail)

    x = jax.random.normal(k_x, (num_nodes, feat_dim), jnp.float32)
    edge_label_index = jax.random.randint(
        k_idx, (2, num_edges), 0, num_nodes, dtype=jnp.int32)
    params = init_classifier1_params(k_p, input_dim, hidden_dim, output_dim)

    out = classifier1_forward(x, edge_label_index, params)
    out = jax.block_until_ready(out)

    ref = classifier1_reference(x, edge_label_index, params)
    assert out.shape == (num_edges, output_dim)
    assert jnp.allclose(out, ref, atol=2e-5, rtol=2e-5), "mismatch vs reference"

    print("KERNEL_OK")
</pallas_src>

<mosaic_0001>
module attributes {stable_mosaic.version = 11 : i64} {
  func.func @_edge_mlp_kernel(%arg0: i32, %arg1: memref<2x128xi32, #tpu.memory_space<vmem>>, %arg2: memref<32x128xf32, #tpu.memory_space<vmem>>, %arg3: memref<32x128xf32, #tpu.memory_space<vmem>>, %arg4: memref<16x32xf32, #tpu.memory_space<vmem>>, %arg5: memref<16x1xf32, #tpu.memory_space<vmem>>, %arg6: memref<8x16xf32, #tpu.memory_space<vmem>>, %arg7: memref<8x1xf32, #tpu.memory_space<vmem>>, %arg8: memref<8x128xf32, #tpu.memory_space<vmem>>) attributes {dimension_semantics = [#tpu.dimension_semantics<parallel>], iteration_bounds = array<i64: 2>, scalar_prefetch = 0 : i64, scratch_operands = 0 : i64, tpu.core_type = #tpu.core_type<tc>, window_params = [{transform_indices = @transform_0, window_bounds = array<i64: 2, 128>}, {pipeline_mode = #tpu.pipeline_mode<synchronous>, transform_indices = @transform_1, window_bounds = array<i64: 32, 128>}, {pipeline_mode = #tpu.pipeline_mode<synchronous>, transform_indices = @transform_2, window_bounds = array<i64: 32, 128>}, {pipeline_mode = #tpu.pipeline_mode<synchronous>, transform_indices = @transform_3, window_bounds = array<i64: 16, 32>}, {pipeline_mode = #tpu.pipeline_mode<synchronous>, transform_indices = @transform_4, window_bounds = array<i64: 16, 1>}, {pipeline_mode = #tpu.pipeline_mode<synchronous>, transform_indices = @transform_5, window_bounds = array<i64: 8, 16>}, {pipeline_mode = #tpu.pipeline_mode<synchronous>, transform_indices = @transform_6, window_bounds = array<i64: 8, 1>}, {transform_indices = @transform_7, window_bounds = array<i64: 8, 128>}]} {
    %0 = tpu.iota {dimensions = array<i32: 0>} : vector<128x128xi32>
    %c0 = arith.constant 0 : index
    %c0_0 = arith.constant 0 : index
    %1 = vector.load %arg1[%c0, %c0_0] : memref<2x128xi32, #tpu.memory_space<vmem>>, vector<1x128xi32>
    %2 = vector.broadcast %1 : vector<1x128xi32> to vector<128x128xi32>
    %3 = arith.cmpi eq, %0, %2 : vector<128x128xi32>
    %4 = arith.extui %3 : vector<128x128xi1> to vector<128x128xi32>
    %5 = arith.sitofp %4 : vector<128x128xi32> to vector<128x128xf32>
    %c1 = arith.constant 1 : index
    %c0_1 = arith.constant 0 : index
    %6 = vector.load %arg1[%c1, %c0_1] : memref<2x128xi32, #tpu.memory_space<vmem>>, vector<1x128xi32>
    %7 = vector.broadcast %6 : vector<1x128xi32> to vector<128x128xi32>
    %8 = arith.cmpi eq, %0, %7 : vector<128x128xi32>
    %9 = arith.extui %8 : vector<128x128xi1> to vector<128x128xi32>
    %10 = arith.sitofp %9 : vector<128x128xi32> to vector<128x128xf32>
    %c0_2 = arith.constant 0 : index
    %c0_3 = arith.constant 0 : index
    %11 = vector.load %arg2[%c0_2, %c0_3] : memref<32x128xf32, #tpu.memory_space<vmem>>, vector<32x128xf32>
    %cst = arith.constant dense<0.000000e+00> : vector<32x128xf32>
    %12 = tpu.matmul %11, %5, %cst {dimension_numbers = #tpu.dot_dimension_numbers<[1], [0], [0], [1], [0, 0, 1, 1], [], []>} : vector<32x128xf32>, vector<128x128xf32>, vector<32x128xf32> -> vector<32x128xf32>
    %c0_4 = arith.constant 0 : index
    %c0_5 = arith.constant 0 : index
    %13 = vector.load %arg3[%c0_4, %c0_5] : memref<32x128xf32, #tpu.memory_space<vmem>>, vector<32x128xf32>
    %cst_6 = arith.constant dense<0.000000e+00> : vector<32x128xf32>
    %14 = tpu.matmul %13, %10, %cst_6 {dimension_numbers = #tpu.dot_dimension_numbers<[1], [0], [0], [1], [0, 0, 1, 1], [], []>} : vector<32x128xf32>, vector<128x128xf32>, vector<32x128xf32> -> vector<32x128xf32>
    %15 = arith.addf %12, %14 : vector<32x128xf32>
    %cst_7 = arith.constant 0.000000e+00 : f32
    %16 = vector.broadcast %cst_7 : f32 to vector<32x128xf32>
    %17 = arith.maximumf %15, %16 : vector<32x128xf32>
    %c0_8 = arith.constant 0 : index
    %c0_9 = arith.constant 0 : index
    %18 = vector.load %arg4[%c0_8, %c0_9] : memref<16x32xf32, #tpu.memory_space<vmem>>, vector<16x32xf32>
    %cst_10 = arith.constant dense<0.000000e+00> : vector<16x128xf32>
    %19 = tpu.matmul %18, %17, %cst_10 {dimension_numbers = #tpu.dot_dimension_numbers<[1], [0], [0], [1], [0, 0, 1, 1], [], []>} : vector<16x32xf32>, vector<32x128xf32>, vector<16x128xf32> -> vector<16x128xf32>
    %c0_11 = arith.constant 0 : index
    %c0_12 = arith.constant 0 : index
    %20 = vector.load %arg5[%c0_11, %c0_12] : memref<16x1xf32, #tpu.memory_space<vmem>>, vector<16x1xf32>
    %21 = vector.broadcast %20 : vector<16x1xf32> to vector<16x128xf32>
    %22 = arith.addf %19, %21 : vector<16x128xf32>
    %cst_13 = arith.constant 0.000000e+00 : f32
    %23 = vector.broadcast %cst_13 : f32 to vector<16x128xf32>
    %24 = arith.maximumf %22, %23 : vector<16x128xf32>
    %c0_14 = arith.constant 0 : index
    %c0_15 = arith.constant 0 : index
    %25 = vector.load %arg6[%c0_14, %c0_15] : memref<8x16xf32, #tpu.memory_space<vmem>>, vector<8x16xf32>
    %cst_16 = arith.constant dense<0.000000e+00> : vector<8x128xf32>
    %26 = tpu.matmul %25, %24, %cst_16 {dimension_numbers = #tpu.dot_dimension_numbers<[1], [0], [0], [1], [0, 0, 1, 1], [], []>} : vector<8x16xf32>, vector<16x128xf32>, vector<8x128xf32> -> vector<8x128xf32>
    %c0_17 = arith.constant 0 : index
    %c0_18 = arith.constant 0 : index
    %27 = vector.load %arg7[%c0_17, %c0_18] : memref<8x1xf32, #tpu.memory_space<vmem>>, vector<8x1xf32>
    %28 = vector.broadcast %27 : vector<8x1xf32> to vector<8x128xf32>
    %29 = arith.addf %26, %28 : vector<8x128xf32>
    %30 = arith.negf %29 : vector<8x128xf32>
    %31 = math.exp %30 : vector<8x128xf32>
    %cst_19 = arith.constant 1.000000e+00 : f32
    %32 = vector.broadcast %cst_19 : f32 to vector<8x128xf32>
    %33 = arith.addf %32, %31 : vector<8x128xf32>
    %34 = arith.divf %32, %33 : vector<8x128xf32>
    %c0_20 = arith.constant 0 : index
    %c0_21 = arith.constant 0 : index
    %35 = vector.load %arg8[%c0_20, %c0_21] : memref<8x128xf32, #tpu.memory_space<vmem>>, vector<8x128xf32>
    tpu.vector_store %arg8[%c0_20, %c0_21], %34 {strides = array<i32>} : memref<8x128xf32, #tpu.memory_space<vmem>>, vector<8x128xf32>,
    return
  }
  func.func @transform_0(%arg0: i32) -> (i32, i32) {
    %c0_i32 = arith.constant 0 : i32
    %c0_i32_0 = arith.constant 0 : i32
    return %c0_i32, %arg0 : i32, i32
  }
  func.func @transform_1(%arg0: i32) -> (i32, i32) {
    %c0_i32 = arith.constant 0 : i32
    %c0_i32_0 = arith.constant 0 : i32
    %c0_i32_1 = arith.constant 0 : i32
    return %c0_i32, %c0_i32_0 : i32, i32
  }
  func.func @transform_2(%arg0: i32) -> (i32, i32) {
    %c0_i32 = arith.constant 0 : i32
    %c0_i32_0 = arith.constant 0 : i32
    %c0_i32_1 = arith.constant 0 : i32
    return %c0_i32, %c0_i32_0 : i32, i32
  }
  func.func @transform_3(%arg0: i32) -> (i32, i32) {
    %c0_i32 = arith.constant 0 : i32
    %c0_i32_0 = arith.constant 0 : i32
    %c0_i32_1 = arith.constant 0 : i32
    return %c0_i32, %c0_i32_0 : i32, i32
  }
  func.func @transform_4(%arg0: i32) -> (i32, i32) {
    %c0_i32 = arith.constant 0 : i32
    %c0_i32_0 = arith.constant 0 : i32
    %c0_i32_1 = arith.constant 0 : i32
    return %c0_i32, %c0_i32_0 : i32, i32
  }
  func.func @transform_5(%arg0: i32) -> (i32, i32) {
    %c0_i32 = arith.constant 0 : i32
    %c0_i32_0 = arith.constant 0 : i32
    %c0_i32_1 = arith.constant 0 : i32
    return %c0_i32, %c0_i32_0 : i32, i32
  }
  func.func @transform_6(%arg0: i32) -> (i32, i32) {
    %c0_i32 = arith.constant 0 : i32
    %c0_i32_0 = arith.constant 0 : i32
    %c0_i32_1 = arith.constant 0 : i32
    return %c0_i32, %c0_i32_0 : i32, i32
  }
  func.func @transform_7(%arg0: i32) -> (i32, i32) {
    %c0_i32 = arith.constant 0 : i32
    %c0_i32_0 = arith.constant 0 : i32
    return %c0_i32, %arg0 : i32, i32
  }
}

</mosaic_0001>

<llo_original>
// kernel: classifier1_forward.1
$region0: #{classifier1_forward.1}
  #allocation0 [shape = 'u32[]', space=smem, size = 0x4, offset = 0x4, fixed_abs, tag = 'smem constant byte address 0x4 - core index']
  #allocation1 [shape = 'u32[72,128]{1,0:T(1,128)}', space=vmem, size = 0x9000, scoped, tag = 'internal scratch']
  %s0 = inlined_call_operand.vmem [shape: s32[2,256], index: 0, kind: input, shape index: {}]
  %s1 = inlined_call_operand.vmem [shape: f32[32,128], index: 1, kind: input, shape index: {}]
  %s2 = inlined_call_operand.vmem [shape: f32[32,128], index: 2, kind: input, shape index: {}]
  %s3 = inlined_call_operand.vmem [shape: f32[16,32], index: 3, kind: input, shape index: {}]
  %s4 = inlined_call_operand.vmem [shape: f32[16,1], index: 4, kind: input, shape index: {}]
  %s5 = inlined_call_operand.vmem [shape: f32[8,16], index: 5, kind: input, shape index: {}]
  %s6 = inlined_call_operand.vmem [shape: f32[8,1], index: 6, kind: input, shape index: {}]
  %s7 = inlined_call_operand.vmem [shape: f32[8,256], index: 7, kind: output, shape index: {}]
  %s8 = sld [smem:[#allocation0]]
  $region61: #{classifier1_forward.1} parent=0
    _
  %s10 = ssub.s32 1, %s8
  %s11 = scalar_select 0, %s10, %s8
  loop: start=0, step=1, limit=4
  $region2: #{classifier1_forward.1} parent=0 // loop_pre_header
    _
  $region3: #{classifier1_forward.1} parent=0 // loop_header
    %s13 = sphi 0, %s17
    %p14 = scmp.ge.s32.totalorder %s13, 4
    %s23 = sphi 0, %s25
    %s26 = sphi 0, %s23
    %s27 = sphi 0, %s26
    %s43 = sphi 0, %s27
    %s47 = sphi 0, %s47
    %s49 = sphi 0, %s47
    %s50 = sphi 0, %s49
    %s64 = sphi 0, %s50
    %s68 = sphi 0, %s68
    %s70 = sphi 0, %s68
    %s71 = sphi 0, %s70
    %s85 = sphi 0, %s71
    %s89 = sphi 0, %s89
    %s91 = sphi 0, %s89
    %s92 = sphi 0, %s91
    %s106 = sphi 0, %s92
    %s110 = sphi 0, %s110
    %s112 = sphi 0, %s110
    %s113 = sphi 0, %s112
    %s127 = sphi 0, %s113
    %s131 = sphi 0, %s131
    %s133 = sphi 0, %s131
    %s134 = sphi 0, %s133
    %s148 = sphi 0, %s134
    %s152 = sphi 0, %s152
    %s154 = sphi 0, %s152
    %s155 = sphi 0, %s154
    %s169 = sphi 0, %s155
    %s175 = sphi 0, %s177
    %s178 = sphi 0, %s175
    %s179 = sphi 0, %s178
    %s195 = sphi 0, %s179
  $region4: #{classifier1_forward.1} parent=0 // loop_header_branch
    %16 = sbr.rel (%p14) target = $region8
  $region5: #{classifier1_forward.1} parent=0 // loop_body
    %s18 = ssub.s32 %s13, 1
    %s19 = ssub.s32 %s13, 2
    %s20 = sadd.s32 %s13, 1
    %s21 = ssub.s32 %s13, %s20
    %p22 = scmp.eq.s32.totalorder %s21, 0
    %s24 = sadd.s32 %s23, 1
    %s25 = scalar_select %p22, %s23, %s24
    %p28 = pneg %p22
    %p29 = scmp.eq.s32.totalorder %s13, 1
    %p30 = por %p28, %p29
    %p31 = scmp.ne.s32.totalorder %s23, %s26
    %p32 = scmp.eq.s32.totalorder %s13, 0
    %p33 = por %p31, %p32
    %p34 = scmp.ne.s32.totalorder %s23, %s26
    %p35 = scmp.eq.s32.totalorder %s18, 1
    %p36 = por %p34, %p35
    %p37 = scmp.ne.s32.totalorder %s26, %s27
    %p38 = scmp.eq.s32.totalorder %s18, 0
    %p39 = por %p37, %p38
    %p40 = scmp.ne.s32.totalorder %s26, %s27
    %p41 = scmp.eq.s32.totalorder %s19, 1
    %p42 = por %p40, %p41
    %p44 = scmp.ne.s32.totalorder %s27, %s43
    %p45 = scmp.eq.s32.totalorder %s19, 0
    %p46 = por %p44, %p45
    %s48 = sadd.s32 %s47, 1
    %p51 = scmp.eq.s32.totalorder %s13, 1
    %p52 = scmp.ne.s32.totalorder %s47, %s49
    %p53 = scmp.eq.s32.totalorder %s13, 0
    %p54 = por %p52, %p53
    %p55 = scmp.ne.s32.totalorder %s47, %s49
    %p56 = scmp.eq.s32.totalorder %s18, 1
    %p57 = por %p55, %p56
    %p58 = scmp.ne.s32.totalorder %s49, %s50
    %p59 = scmp.eq.s32.totalorder %s18, 0
    %p60 = por %p58, %p59
    %p61 = scmp.ne.s32.totalorder %s49, %s50
    %p62 = scmp.eq.s32.totalorder %s19, 1
    %p63 = por %p61, %p62
    %p65 = scmp.ne.s32.totalorder %s50, %s64
    %p66 = scmp.eq.s32.totalorder %s19, 0
    %p67 = por %p65, %p66
    %s69 = sadd.s32 %s68, 1
    %p72 = scmp.eq.s32.totalorder %s13, 1
    %p73 = scmp.ne.s32.totalorder %s68, %s70
    %p74 = scmp.eq.s32.totalorder %s13, 0
    %p75 = por %p73, %p74
    %p76 = scmp.ne.s32.totalorder %s68, %s70
    %p77 = scmp.eq.s32.totalorder %s18, 1
    %p78 = por %p76, %p77
    %p79 = scmp.ne.s32.totalorder %s70, %s71
    %p80 = scmp.eq.s32.totalorder %s18, 0
    %p81 = por %p79, %p80
    %p82 = scmp.ne.s32.totalorder %s70, %s71
    %p83 = scmp.eq.s32.totalorder %s19, 1
    %p84 = por %p82, %p83
    %p86 = scmp.ne.s32.totalorder %s71, %s85
    %p87 = scmp.eq.s32.totalorder %s19, 0
    %p88 = por %p86, %p87
    %s90 = sadd.s32 %s89, 1
    %p93 = scmp.eq.s32.totalorder %s13, 1
    %p94 = scmp.ne.s32.totalorder %s89, %s91
    %p95 = scmp.eq.s32.totalorder %s13, 0
    %p96 = por %p94, %p95
    %p97 = scmp.ne.s32.totalorder %s89, %s91
    %p98 = scmp.eq.s32.totalorder %s18, 1
    %p99 = por %p97, %p98
    %p100 = scmp.ne.s32.totalorder %s91, %s92
    %p101 = scmp.eq.s32.totalorder %s18, 0
    %p102 = por %p100, %p101
    %p103 = scmp.ne.s32.totalorder %s91, %s92
    %p104 = scmp.eq.s32.totalorder %s19, 1
    %p105 = por %p103, %p104
    %p107 = scmp.ne.s32.totalorder %s92, %s106
    %p108 = scmp.eq.s32.totalorder %s19, 0
    %p109 = por %p107, %p108
    %s111 = sadd.s32 %s110, 1
    %p114 = scmp.eq.s32.totalorder %s13, 1
    %p115 = scmp.ne.s32.totalorder %s110, %s112
    %p116 = scmp.eq.s32.totalorder %s13, 0
    %p117 = por %p115, %p116
    %p118 = scmp.ne.s32.totalorder %s110, %s112
    %p119 = scmp.eq.s32.totalorder %s18, 1
    %p120 = por %p118, %p119
    %p121 = scmp.ne.s32.totalorder %s112, %s113
    %p122 = scmp.eq.s32.totalorder %s18, 0
    %p123 = por %p121, %p122
    %p124 = scmp.ne.s32.totalorder %s112, %s113
    %p125 = scmp.eq.s32.totalorder %s19, 1
    %p126 = por %p124, %p125
    %p128 = scmp.ne.s32.totalorder %s113, %s127
    %p129 = scmp.eq.s32.totalorder %s19, 0
    %p130 = por %p128, %p129
    %s132 = sadd.s32 %s131, 1
    %p135 = scmp.eq.s32.totalorder %s13, 1
    %p136 = scmp.ne.s32.totalorder %s131, %s133
    %p137 = scmp.eq.s32.totalorder %s13, 0
    %p138 = por %p136, %p137
    %p139 = scmp.ne.s32.totalorder %s131, %s133
    %p140 = scmp.eq.s32.totalorder %s18, 1
    %p141 = por %p139, %p140
    %p142 = scmp.ne.s32.totalorder %s133, %s134
    %p143 = scmp.eq.s32.totalorder %s18, 0
    %p144 = por %p142, %p143
    %p145 = scmp.ne.s32.totalorder %s133, %s134
    %p146 = scmp.eq.s32.totalorder %s19, 1
    %p147 = por %p145, %p146
    %p149 = scmp.ne.s32.totalorder %s134, %s148
    %p150 = scmp.eq.s32.totalorder %s19, 0
    %p151 = por %p149, %p150
    %s153 = sadd.s32 %s152, 1
    %p156 = scmp.eq.s32.totalorder %s13, 1
    %p157 = scmp.ne.s32.totalorder %s152, %s154
    %p158 = scmp.eq.s32.totalorder %s13, 0
    %p159 = por %p157, %p158
    %p160 = scmp.ne.s32.totalorder %s152, %s154
    %p161 = scmp.eq.s32.totalorder %s18, 1
    %p162 = por %p160, %p161
    %p163 = scmp.ne.s32.totalorder %s154, %s155
    %p164 = scmp.eq.s32.totalorder %s18, 0
    %p165 = por %p163, %p164
    %p166 = scmp.ne.s32.totalorder %s154, %s155
    %p167 = scmp.eq.s32.totalorder %s19, 1
    %p168 = por %p166, %p167
    %p170 = scmp.ne.s32.totalorder %s155, %s169
    %p171 = scmp.eq.s32.totalorder %s19, 0
    %p172 = por %p170, %p171
    %s173 = ssub.s32 %s13, %s20
    %p174 = scmp.eq.s32.totalorder %s173, 0
    %s176 = sadd.s32 %s175, 1
    %s177 = scalar_select %p174, %s175, %s176
    %p180 = pneg %p174
    %p181 = scmp.eq.s32.totalorder %s13, 1
    %p182 = por %p180, %p181
    %p183 = scmp.ne.s32.totalorder %s175, %s178
    %p184 = scmp.eq.s32.totalorder %s13, 0
    %p185 = por %p183, %p184
    %p186 = scmp.ne.s32.totalorder %s175, %s178
    %p187 = scmp.eq.s32.totalorder %s18, 1
    %p188 = por %p186, %p187
    %p189 = scmp.ne.s32.totalorder %s178, %s179
    %p190 = scmp.eq.s32.totalorder %s18, 0
    %p191 = por %p189, %p190
    %p192 = scmp.ne.s32.totalorder %s178, %s179
    %p193 = scmp.eq.s32.totalorder %s19, 1
    %p194 = por %p192, %p193
    %p196 = scmp.ne.s32.totalorder %s179, %s195
    %p197 = scmp.eq.s32.totalorder %s19, 0
    %p198 = por %p196, %p197
    %p199 = scmp.le.s32.totalorder 1, %s13
    %p200 = scmp.lt.s32.totalorder %s13, 3
    %p201 = pnand %p199, %p200
    %p202 = pneg %p201
    // Predicated region
    $region9: #{classifier1_forward.1} parent=5 // pred_check
      _
    $region10: #{classifier1_forward.1} parent=5 // pred_check_branch
      %204 = sbr.rel (%p201) target = $region12
    $region11: #{classifier1_forward.1} parent=5 // pred_region
      %s205 = ssub.s32 %s13, 1
      // Predicated region
      $region13: #{classifier1_forward.1} parent=11 // pred_check
        %p206 = pneg %p60
      $region14: #{classifier1_forward.1} parent=11 // pred_check_branch
        %208 = sbr.rel (%p206) target = $region16
      $region15: #{classifier1_forward.1} parent=11 // pred_region
        _
      $region16: #{classifier1_forward.1} parent=11 // pred_fallthru
        _
      // Predicated region
      $region17: #{classifier1_forward.1} parent=11 // pred_check
        %p209 = pneg %p81
      $region18: #{classifier1_forward.1} parent=11 // pred_check_branch
        %211 = sbr.rel (%p209) target = $region20
      $region19: #{classifier1_forward.1} parent=11 // pred_region
        _
      $region20: #{classifier1_forward.1} parent=11 // pred_fallthru
        _
      // Predicated region
      $region21: #{classifier1_forward.1} parent=11 // pred_check
        %p212 = pneg %p102
      $region22: #{classifier1_forward.1} parent=11 // pred_check_branch
        %214 = sbr.rel (%p212) target = $region24
      $region23: #{classifier1_forward.1} parent=11 // pred_region
        _
      $region24: #{classifier1_forward.1} parent=11 // pred_fallthru
        _
      // Predicated region
      $region25: #{classifier1_forward.1} parent=11 // pred_check
        %p215 = pneg %p123
      $region26: #{classifier1_forward.1} parent=11 // pred_check_branch
        %217 = sbr.rel (%p215) target = $region28
      $region27: #{classifier1_forward.1} parent=11 // pred_region
        _
      $region28: #{classifier1_forward.1} parent=11 // pred_fallthru
        _
      // Predicated region
      $region29: #{classifier1_forward.1} parent=11 // pred_check
        %p218 = pneg %p144
      $region30: #{classifier1_forward.1} parent=11 // pred_check_branch
        %220 = sbr.rel (%p218) target = $region32
      $region31: #{classifier1_forward.1} parent=11 // pred_region
        _
      $region32: #{classifier1_forward.1} parent=11 // pred_fallthru
        _
      // Predicated region
      $region33: #{classifier1_forward.1} parent=11 // pred_check
        %p221 = pneg %p165
      $region34: #{classifier1_forward.1} parent=11 // pred_check_branch
        %223 = sbr.rel (%p221) target = $region36
      $region35: #{classifier1_forward.1} parent=11 // pred_region
        _
      $region36: #{classifier1_forward.1} parent=11 // pred_fallthru
        _
    $region12: #{classifier1_forward.1} parent=5 // pred_fallthru
      _
    %p224 = scmp.lt.s32.totalorder %s13, 2
    // Predicated region
    $region37: #{classifier1_forward.1} parent=5 // pred_check
      %p225 = pneg %p224
    $region38: #{classifier1_forward.1} parent=5 // pred_check_branch
      %227 = sbr.rel (%p225) target = $region40
    $region39: #{classifier1_forward.1} parent=5 // pred_region
      // Predicated region
      $region41: #{classifier1_forward.1} parent=39 // pred_check
        %p228 = pneg %p33
      $region42: #{classifier1_forward.1} parent=39 // pred_check_branch
        %230 = sbr.rel (%p228) target = $region44
      $region43: #{classifier1_forward.1} parent=39 // pred_region
        %p231 = scmp.lt.s32.totalorder %s13, 1
        %s232 = scalar_select %p231, %s13, 1
        %s233 = smul.addr %s232, 2
        %s234 = scalar_lea.vmem %s0, %s233
      $region44: #{classifier1_forward.1} parent=39 // pred_fallthru
        _
    $region40: #{classifier1_forward.1} parent=5 // pred_fallthru
      _
    %p235 = scmp.le.s32.totalorder 1, %s13
    %p236 = scmp.lt.s32.totalorder %s13, 3
    %p237 = pnand %p235, %p236
    %p238 = pneg %p237
    // Predicated region
    $region45: #{classifier1_forward.1} parent=5 // pred_check
      _
    $region46: #{classifier1_forward.1} parent=5 // pred_check_branch
      %240 = sbr.rel (%p237) target = $region48
    $region47: #{classifier1_forward.1} parent=5 // pred_region
      %s241 = ssub.s32 %s13, 1
      %p242 = scmp.lt.s32.totalorder %s18, 1
      %s243 = scalar_select %p242, %s18, 1
      %s244 = smul.addr %s243, 2
      %s245 = scalar_lea.vmem %s0, %s244
      %p246 = pneg %p39
      %p247 = pneg %p36
      %p248 = pneg %p60
      %p249 = pneg %p57
      %p250 = pneg %p81
      %p251 = pneg %p78
      %p252 = pneg %p102
      %p253 = pneg %p99
      %p254 = pneg %p123
      %p255 = pneg %p120
      %p256 = pneg %p144
      %p257 = pneg %p141
      %p258 = pneg %p165
      %p259 = pneg %p162
      %p260 = pneg %p191
      %p261 = pneg %p188
      %p262 = scmp.lt.s32.totalorder %s18, 1
      %s263 = scalar_select %p262, %s18, 1
      %s264 = smul.addr %s263, 8
      %s265 = scalar_lea.vmem %s7, %s264
      %p266 = scmp.lt.s32.totalorder %s18, 1
      %s267 = scalar_select %p266, %s18, 1
      %s268 = smul.addr %s267, 2
      %s269 = scalar_lea.vmem %s0, %s268
      %p270 = scmp.lt.s32.totalorder %s18, 1
      %s271 = scalar_select %p270, %s18, 1
      %s272 = smul.addr %s271, 8
      %s273 = scalar_lea.vmem %s7, %s272
      %v274 = vlaneseq
      %v275 = vshrl.u32 %v274, 7
      %v276 = vadd.s32 %v275, 8
      %v277 = vadd.s32 %v275, 16
      %v278 = vadd.s32 %v275, 24
      %v279 = vadd.s32 %v275, 32
      %v280 = vadd.s32 %v275, 40
      %v281 = vadd.s32 %v275, 48
      %v282 = vadd.s32 %v275, 56
      %v283 = vadd.s32 %v275, 64
      %v284 = vadd.s32 %v275, 72
      %v285 = vadd.s32 %v275, 80
      %v286 = vadd.s32 %v275, 88
      %v287 = vadd.s32 %v275, 96
      %v288 = vadd.s32 %v275, 104
      %v289 = vadd.s32 %v275, 112
      %v290 = vadd.s32 %v275, 120
      %v291 = vld [vmem:[%s269] sm:$0x1]
      %v292 = vperm.slane %v291, 0
      %vm293 = vcmp.eq.s32.totalorder %v275, %v292
      %vm294 = vcmp.eq.s32.totalorder %v276, %v292
      %vm295 = vcmp.eq.s32.totalorder %v277, %v292
      %vm296 = vcmp.eq.s32.totalorder %v278, %v292
      %vm297 = vcmp.eq.s32.totalorder %v279, %v292
      %vm298 = vcmp.eq.s32.totalorder %v280, %v292
      %vm299 = vcmp.eq.s32.totalorder %v281, %v292
      %vm300 = vcmp.eq.s32.totalorder %v282, %v292
      %vm301 = vcmp.eq.s32.totalorder %v283, %v292
      %vm302 = vcmp.eq.s32.totalorder %v284, %v292
      %vm303 = vcmp.eq.s32.totalorder %v285, %v292
      %vm304 = vcmp.eq.s32.totalorder %v286, %v292
      %vm305 = vcmp.eq.s32.totalorder %v287, %v292
      %vm306 = vcmp.eq.s32.totalorder %v288, %v292
      %vm307 = vcmp.eq.s32.totalorder %v289, %v292
      %vm308 = vcmp.eq.s32.totalorder %v290, %v292
      %v309 = vsel %vm293, 1, 0
      %v310 = vsel %vm294, 1, 0
      %v311 = vsel %vm295, 1, 0
      %v312 = vsel %vm296, 1, 0
      %v313 = vsel %vm297, 1, 0
      %v314 = vsel %vm298, 1, 0
      %v315 = vsel %vm299, 1, 0
      %v316 = vsel %vm300, 1, 0
      %v317 = vsel %vm301, 1, 0
      %v318 = vsel %vm302, 1, 0
      %v319 = vsel %vm303, 1, 0
      %v320 = vsel %vm304, 1, 0
      %v321 = vsel %vm305, 1, 0
      %v322 = vsel %vm306, 1, 0
      %v323 = vsel %vm307, 1, 0
      %v324 = vsel %vm308, 1, 0
      %v325 = vcvt.s32.f32 %v309
      %v326 = vcvt.s32.f32 %v310
      %v327 = vcvt.s32.f32 %v311
      %v328 = vcvt.s32.f32 %v312
      %v329 = vcvt.s32.f32 %v313
      %v330 = vcvt.s32.f32 %v314
      %v331 = vcvt.s32.f32 %v315
      %v332 = vcvt.s32.f32 %v316
      %v333 = vcvt.s32.f32 %v317
      %v334 = vcvt.s32.f32 %v318
      %v335 = vcvt.s32.f32 %v319
      %v336 = vcvt.s32.f32 %v320
      %v337 = vcvt.s32.f32 %v321
      %v338 = vcvt.s32.f32 %v322
      %v339 = vcvt.s32.f32 %v323
      %v340 = vcvt.s32.f32 %v324
      %v341 = vld [vmem:[%s269 + $0x1] sm:$0x1]
      %v342 = vperm.slane %v341, 0
      %vm343 = vcmp.eq.s32.totalorder %v275, %v342
      %vm344 = vcmp.eq.s32.totalorder %v276, %v342
      %vm345 = vcmp.eq.s32.totalorder %v277, %v342
      %vm346 = vcmp.eq.s32.totalorder %v278, %v342
      %vm347 = vcmp.eq.s32.totalorder %v279, %v342
      %vm348 = vcmp.eq.s32.totalorder %v280, %v342
      %vm349 = vcmp.eq.s32.totalorder %v281, %v342
      %vm350 = vcmp.eq.s32.totalorder %v282, %v342
      %vm351 = vcmp.eq.s32.totalorder %v283, %v342
      %vm352 = vcmp.eq.s32.totalorder %v284, %v342
      %vm353 = vcmp.eq.s32.totalorder %v285, %v342
      %vm354 = vcmp.eq.s32.totalorder %v286, %v342
      %vm355 = vcmp.eq.s32.totalorder %v287, %v342
      %vm356 = vcmp.eq.s32.totalorder %v288, %v342
      %vm357 = vcmp.eq.s32.totalorder %v289, %v342
      %vm358 = vcmp.eq.s32.totalorder %v290, %v342
      %v359 = vsel %vm343, 1, 0
      %v360 = vsel %vm344, 1, 0
      %v361 = vsel %vm345, 1, 0
      %v362 = vsel %vm346, 1, 0
      %v363 = vsel %vm347, 1, 0
      %v364 = vsel %vm348, 1, 0
      %v365 = vsel %vm349, 1, 0
      %v366 = vsel %vm350, 1, 0
      %v367 = vsel %vm351, 1, 0
      %v368 = vsel %vm352, 1, 0
      %v369 = vsel %vm353, 1, 0
      %v370 = vsel %vm354, 1, 0
      %v371 = vsel %vm355, 1, 0
      %v372 = vsel %vm356, 1, 0
      %v373 = vsel %vm357, 1, 0
      %v374 = vsel %vm358, 1, 0
      %v375 = vcvt.s32.f32 %v359
      %v376 = vcvt.s32.f32 %v360
      %v377 = vcvt.s32.f32 %v361
      %v378 = vcvt.s32.f32 %v362
      %v379 = vcvt.s32.f32 %v363
      %v380 = vcvt.s32.f32 %v364
      %v381 = vcvt.s32.f32 %v365
      %v382 = vcvt.s32.f32 %v366
      %v383 = vcvt.s32.f32 %v367
      %v384 = vcvt.s32.f32 %v368
      %v385 = vcvt.s32.f32 %v369
      %v386 = vcvt.s32.f32 %v370
      %v387 = vcvt.s32.f32 %v371
      %v388 = vcvt.s32.f32 %v372
      %v389 = vcvt.s32.f32 %v373
      %v390 = vcvt.s32.f32 %v374
      %v391 = vld [vmem:[%s1] sm:$0xff]
      %v392 = vld [vmem:[%s1 + $0x8] sm:$0xff]
      %v393 = vld [vmem:[%s1 + $0x10] sm:$0xff]
      %v394 = vld [vmem:[%s1 + $0x18] sm:$0xff]
      %v395 = vld [vmem:[%s2] sm:$0xff]
      %v396 = vld [vmem:[%s2 + $0x8] sm:$0xff]
      %v397 = vld [vmem:[%s2 + $0x10] sm:$0xff]
      %v398 = vld [vmem:[%s2 + $0x18] sm:$0xff]
      %399 = vmatpush.msra.mxu0 %v390
      %400 = vmatpush.msra.mxu0 %v389
      %401 = vmatpush.msra.mxu0 %v388
      %402 = vmatpush.msra.mxu0 %v387
      %403 = vmatpush.msra.mxu0 %v386
      %404 = vmatpush.msra.mxu0 %v385
      %405 = vmatpush.msra.mxu0 %v384
      %406 = vmatpush.msra.mxu0 %v383
      %407 = vmatpush.msra.mxu0 %v382
      %408 = vmatpush.msra.mxu0 %v381
      %409 = vmatpush.msra.mxu0 %v380
      %410 = vmatpush.msra.mxu0 %v379
      %411 = vmatpush.msra.mxu0 %v378
      %412 = vmatpush.msra.mxu0 %v377
      %413 = vmatpush.msra.mxu0 %v376
      %414 = vmatpush.msra.mxu0 %v375
      %415 = vmatmul.f32.gmra.mxu0 %v395
      %v416 = vpop.f32.mrf.mxu0
      %v417 = vadd.f32 0.0, %v416
      %418 = vmatmul.f32.gmra.mxu0 %v396
      %v419 = vpop.f32.mrf.mxu0
      %v420 = vadd.f32 0.0, %v419
      %421 = vmatmul.f32.gmra.mxu0 %v397
      %v422 = vpop.f32.mrf.mxu0
      %v423 = vadd.f32 0.0, %v422
      %424 = vmatmul.f32.gmra.mxu0 %v398
      %v425 = vpop.f32.mrf.mxu0
      %v426 = vadd.f32 0.0, %v425
      %427 = vdwg.mxu0
      %428 = vmatpush.msra.mxu0 %v340
      %429 = vmatpush.msra.mxu0 %v339
      %430 = vmatpush.msra.mxu0 %v338
      %431 = vmatpush.msra.mxu0 %v337
      %432 = vmatpush.msra.mxu0 %v336
      %433 = vmatpush.msra.mxu0 %v335
      %434 = vmatpush.msra.mxu0 %v334
      %435 = vmatpush.msra.mxu0 %v333
      %436 = vmatpush.msra.mxu0 %v332
      %437 = vmatpush.msra.mxu0 %v331
      %438 = vmatpush.msra.mxu0 %v330
      %439 = vmatpush.msra.mxu0 %v329
      %440 = vmatpush.msra.mxu0 %v328
      %441 = vmatpush.msra.mxu0 %v327
      %442 = vmatpush.msra.mxu0 %v326
      %443 = vmatpush.msra.mxu0 %v325
      %444 = vmatmul.f32.gmra.mxu0 %v391
      %v445 = vpop.f32.mrf.mxu0
      %v446 = vadd.f32 %v417, %v445
      %447 = vmatmul.f32.gmra.mxu0 %v392
      %v448 = vpop.f32.mrf.mxu0
      %v449 = vadd.f32 %v420, %v448
      %450 = vmatmul.f32.gmra.mxu0 %v393
      %v451 = vpop.f32.mrf.mxu0
      %v452 = vadd.f32 %v423, %v451
      %453 = vmatmul.f32.gmra.mxu0 %v394
      %v454 = vpop.f32.mrf.mxu0
      %v455 = vadd.f32 %v426, %v454
      %456 = vdwg.mxu0
      %v457 = vmax.f32 %v446, 0.0
      %v458 = vmax.f32 %v449, 0.0
      %v459 = vmax.f32 %v452, 0.0
      %v460 = vmax.f32 %v455, 0.0
      %v461 = vld [vmem:[%s3] sm:$0xff]
      %v462 = vld [vmem:[%s3 + $0x8] sm:$0xff]
      %v463 = vld [vmem:[%s4] sm:$0xff]
      %v464 = vld [vmem:[%s4 + $0x8] sm:$0xff]
      %466 = vset.pattern.permute.xlu0 0
      %467 = vperm.xlu0 %466, %v463
      %v468 = vpop.permute.xlu0 %467
      %471 = vset.pattern.permute.xlu0 0
      %472 = vperm.xlu0 %471, %v464
      %v473 = vpop.permute.xlu0 %472
      %vm475 = vcmask 261120
      %v477 = vsel %vm475, %v461, 0
      %v480 = vsel %vm475, %v462, 0
      %482 = vmatpush.msra.mxu0 0.0
      %483 = vmatpush.msra.mxu0 0.0
      %484 = vmatpush.msra.mxu0 0.0
      %485 = vmatpush.msra.mxu0 0.0
      %486 = vmatpush.msra.mxu0 0.0
      %487 = vmatpush.msra.mxu0 0.0
      %488 = vmatpush.msra.mxu0 0.0
      %489 = vmatpush.msra.mxu0 0.0
      %490 = vmatpush.msra.mxu0 0.0
      %491 = vmatpush.msra.mxu0 0.0
      %492 = vmatpush.msra.mxu0 0.0
      %493 = vmatpush.msra.mxu0 0.0
      %494 = vmatpush.msra.mxu0 %v460
      %495 = vmatpush.msra.mxu0 %v459
      %496 = vmatpush.msra.mxu0 %v458
      %497 = vmatpush.msra.mxu0 %v457
      %498 = vmatmul.f32.gmra.mxu0 %v477
      %v499 = vpop.f32.mrf.mxu0
      %v500 = vadd.f32 %v468, %v499
      %501 = vmatmul.f32.gmra.mxu0 %v480
      %v502 = vpop.f32.mrf.mxu0
      %v503 = vadd.f32 %v473, %v502
      %504 = vdwg.mxu0
      %v505 = vmax.f32 %v500, 0.0
      %v506 = vmax.f32 %v503, 0.0
      %v507 = vld [vmem:[%s5] sm:$0xff]
      %v508 = vld [vmem:[%s6] sm:$0xff]
      %510 = vset.pattern.permute.xlu0 0
      %511 = vperm.xlu0 %510, %v508
      %v512 = vpop.permute.xlu0 %511
      %vm514 = vcmask 130048
      %v516 = vsel %vm514, %v507, 0
      %518 = vmatpush.msra.mxu0 0.0
      %519 = vmatpush.msra.mxu0 0.0
      %520 = vmatpush.msra.mxu0 0.0
      %521 = vmatpush.msra.mxu0 0.0
      %522 = vmatpush.msra.mxu0 0.0
      %523 = vmatpush.msra.mxu0 0.0
      %524 = vmatpush.msra.mxu0 0.0
      %525 = vmatpush.msra.mxu0 0.0
      %526 = vmatpush.msra.mxu0 0.0
      %527 = vmatpush.msra.mxu0 0.0
      %528 = vmatpush.msra.mxu0 0.0
      %529 = vmatpush.msra.mxu0 0.0
      %530 = vmatpush.msra.mxu0 0.0
      %531 = vmatpush.msra.mxu0 0.0
      %532 = vmatpush.msra.mxu0 %v506
      %533 = vmatpush.msra.mxu0 %v505
      %534 = vmatmul.f32.gmra.mxu0 %v516
      %v535 = vpop.f32.mrf.mxu0
      %v536 = vadd.f32 %v512, %v535
      %537 = vdwg.mxu0
      %v538 = vxor.u32 %v536, 2147483648
      %v539 = vmul.f32 %v538, 1.442695
      %v540 = vpow.pop %v539
      %v541 = vadd.f32 %v540, 1.0
      %v542 = vrcp.pop %v541
      %v543 = vmul.f32 %v541, %v542
      %v544 = vsub.f32 1.0, %v543
      %v545 = vmul.f32 %v542, %v544
      %v546 = vadd.f32 %v542, %v545
      %vm547 = vweird.f32 %v541
      %vm548 = vweird.f32 %v542
      %vm549 = vmor %vm547, %vm548
      %v550 = vsel %vm549, %v542, %v546
      %v551 = vand.u32 2147483647, %v541
      %vm552 = vcmp.eq.f32.partialorder %v551, 8.507059e+37
      %v553 = vand.u32 %v541, 2147483648
      %v554 = vor.u32 1.1754944e-38, %v553
      %v555 = vsel %vm552, %v554, %v550
      %v556 = vmul.f32 1.0, %v555
      %557 = vst [vmem:[%s273] sm:$0xff] %v556
      %p558 = scmp.lt.s32.totalorder %s18, 1
      %s559 = scalar_select %p558, %s18, 1
      %s560 = smul.addr %s559, 8
      %s561 = scalar_lea.vmem %s7, %s560
      // Predicated region
      $region49: #{classifier1_forward.1} parent=47 // pred_check
        %p562 = pneg %p188
      $region50: #{classifier1_forward.1} parent=47 // pred_check_branch
        %564 = sbr.rel (%p562) target = $region52
      $region51: #{classifier1_forward.1} parent=47 // pred_region
        _
      $region52: #{classifier1_forward.1} parent=47 // pred_fallthru
        _
    $region48: #{classifier1_forward.1} parent=5 // pred_fallthru
      _
    %p565 = scmp.le.s32.totalorder 2, %s13
    // Predicated region
    $region53: #{classifier1_forward.1} parent=5 // pred_check
      %p566 = pneg %p565
    $region54: #{classifier1_forward.1} parent=5 // pred_check_branch
      %568 = sbr.rel (%p566) target = $region56
    $region55: #{classifier1_forward.1} parent=5 // pred_region
      %s569 = ssub.s32 %s13, 2
      // Predicated region
      $region57: #{classifier1_forward.1} parent=55 // pred_check
        %p570 = pneg %p194
      $region58: #{classifier1_forward.1} parent=55 // pred_check_branch
        %572 = sbr.rel (%p570) target = $region60
      $region59: #{classifier1_forward.1} parent=55 // pred_region
        %p573 = scmp.lt.s32.totalorder %s19, 1
        %s574 = scalar_select %p573, %s19, 1
        %s575 = smul.addr %s574, 8
        %s576 = scalar_lea.vmem %s7, %s575
      $region60: #{classifier1_forward.1} parent=55 // pred_fallthru
        _
    $region56: #{classifier1_forward.1} parent=5 // pred_fallthru
      _
  $region6: #{classifier1_forward.1} parent=0 // loop_footer
    %s17 = sadd.s32 1, %s13
  $region7: #{classifier1_forward.1} parent=0 // loop_footer_branch
    %12 = sbr.rel target = $region3
  $region8: #{classifier1_forward.1} parent=0 // loop_exit
    _

</llo_original>
